<compile_context>
chip_gen: v6e
topology: v6e:2x2x1
jax: 0.10.0
libtpu: 0.0.40
codegen_flags: <defaults>
</compile_context>

<pallas_src>
import functools

import jax
import jax.numpy as jnp
from jax.experimental import pallas as pl
from jax.experimental.pallas import tpu as pltpu


# Max contraction-block width (x columns per K step) before K-splitting kicks
# in.  Must be a multiple of 128.  prepare_maxout_params and maxout_forward
# must agree on this value.
_MAX_K_BLOCK = 2048


def _round_up(n, m):
    return ((n + m - 1) // m) * m


def _maxout_kernel(x_ref, w_ref, b_ref, o_ref, acc_ref, *,
                   out_features, k, compute_dtype):
    # x_ref: (TB, TK) input dtype (cast to bf16 in-kernel), w_ref: (TK, OUT*K)
    # bf16 chunk-permuted, b_ref: (1, OUT*K) f32, o_ref: (TB, OUT) out_dtype,
    # acc_ref: (TB, OUT*K) f32 scratch persisting across the K grid axis.
    kk = pl.program_id(1)

    @pl.when(kk == 0)
    def _():
        acc_ref[...] = jnp.zeros_like(acc_ref)

    acc_ref[...] += jnp.dot(x_ref[...].astype(compute_dtype), w_ref[...],
                            preferred_element_type=jnp.float32)

    @pl.when(kk == pl.num_programs(1) - 1)
    def _():
        y = acc_ref[...] + b_ref[...]
        # Maxout over the k chunked pieces: static lane slices + maximum.
        out = y[:, 0:out_features]
        for m in range(1, k):
            out = jnp.maximum(out, y[:, m * out_features:(m + 1) * out_features])
        o_ref[...] = out.astype(o_ref.dtype)


def prepare_maxout_params(weight, bias, *, out_features, k,
                          compute_dtype=jnp.bfloat16):
    """One-time parameter prep (do at model init, not per forward call).

    weight: (out_features*k, in_features) PyTorch layout; bias: (out_features*k,).
    Returns:
      wt: (in_features[, padded], out_features*k) compute_dtype, chunk-permuted
          so that column m*out_features + j == original output j*k + m.
      b2: (1, out_features*k) float32, same chunked column order.

    Note: out_features that is a multiple of 128 keeps the in-kernel maxout
    slices lane-aligned (free vreg selects); other values are correct but may
    incur extra shuffles.
    """
    out_k, in_features = weight.shape
    assert out_k == out_features * k, (out_k, out_features, k)

    # chunked row (m*out + j)  <-  original row (j*k + m)
    w_chunked = weight.reshape(out_features, k, in_features)   # [j, m, :]
    w_chunked = jnp.transpose(w_chunked, (1, 0, 2))            # [m, j, :]
    w_chunked = w_chunked.reshape(out_k, in_features)
    wt = w_chunked.T                                           # (in, out*k)

    b2 = bias.reshape(out_features, k).T.reshape(1, out_k)

    # Only very large layers get K-split in the kernel; pre-pad the contraction
    # dim with zero rows (exact) so every K slab is full-width.
    if in_features > _MAX_K_BLOCK:
        pad = (-in_features) % _MAX_K_BLOCK
        if pad:
            wt = jnp.pad(wt, ((0, pad), (0, 0)))

    return wt.astype(compute_dtype), b2.astype(jnp.float32)


def maxout_forward(x, wt, b2, *, out_features, k, tile_b=None,
                   out_dtype=jnp.float32, compute_dtype=jnp.bfloat16):
    """x: (B, in_features) (any float dtype, typically f32);
    wt/b2: outputs of prepare_maxout_params.
    Returns (B, out_features) out_dtype."""
    B, in_features = x.shape
    in_w, out_k = wt.shape
    assert out_k == out_features * k, (out_k, out_features, k)

    # Contraction tiling: single full-width step for small layers (no padding,
    # no extra HBM traffic); K-split into _MAX_K_BLOCK slabs for huge layers.
    if in_w <= _MAX_K_BLOCK:
        assert in_w == in_features, (in_w, in_features)
        tile_k = in_w
    else:
        tile_k = _MAX_K_BLOCK
        assert in_w % tile_k == 0 and in_w >= in_features, (in_w, in_features)
        if in_w != in_features:
            # Large-layer path only: match x to the pre-padded weight.  Zero
            # weight rows make the pad exact; cost amortized by the big matmul.
            x = jnp.pad(x, ((0, 0), (0, in_w - in_features)))
    num_k = in_w // tile_k

    # Batch tile: multiple of 16 (bf16 sublane packing); capped at 256 so the
    # "parallel" batch axis has >=2 grid steps once B > 256 (dual-TC on v7x).
    if tile_b is None:
        tile_b = 256 if B > 256 else _round_up(max(B, 1), 16)
    num_b = pl.cdiv(B, tile_b)
    grid = (num_b, num_k)

    # Scoped-VMEM estimate from actual block sizes; only raise the limit above
    # the default when needed (cap at v7x physical 64 MiB).
    x_item = jnp.dtype(x.dtype).itemsize
    w_item = jnp.dtype(wt.dtype).itemsize
    o_item = jnp.dtype(out_dtype).itemsize
    vmem_est = (2 * tile_b * tile_k * x_item      # x blocks (double-buffered)
                + 2 * tile_k * out_k * w_item     # weight blocks
                + 2 * out_k * 4                   # bias block
                + 2 * tile_b * out_features * o_item  # output blocks
                + tile_b * out_k * 4)             # f32 accumulator scratch
    vmem_limit = None
    if vmem_est > 32 * 1024 * 1024:
        vmem_limit = min(int(vmem_est * 5 // 4), 64 * 1024 * 1024)

    kernel = functools.partial(_maxout_kernel, out_features=out_features, k=k,
                               compute_dtype=compute_dtype)

    out = pl.pallas_call(
        kernel,
        out_shape=jax.ShapeDtypeStruct((B, out_features), out_dtype),
        grid_spec=pltpu.PrefetchScalarGridSpec(
            num_scalar_prefetch=0,
            grid=grid,
            in_specs=[
                pl.BlockSpec((tile_b, tile_k), lambda i, kk: (i, kk)),
                pl.BlockSpec((tile_k, out_k), lambda i, kk: (kk, 0)),
                pl.BlockSpec((1, out_k), lambda i, kk: (0, 0)),
            ],
            out_specs=pl.BlockSpec((tile_b, out_features),
                                   lambda i, kk: (i, 0)),
            scratch_shapes=[pltpu.VMEM((tile_b, out_k), jnp.float32)],
        ),
        compiler_params=pltpu.CompilerParams(
            dimension_semantics=("parallel", "arbitrary"),
            vmem_limit_bytes=vmem_limit),
    )(x, wt, b2)

    return out


if __name__ == "__main__":
    # Small shapes consistent with the module: Maxout(in_features=64, out_features=128, k=2)
    B, IN, OUT, K = 32, 64, 128, 2

    key = jax.random.PRNGKey(0)
    kx, kw, kb = jax.random.split(key, 3)
    x = jax.random.normal(kx, (B, IN), dtype=jnp.float32)
    # Deterministic "Linear" parameters (PyTorch layout: (out*k, in) weight, (out*k,) bias)
    weight = jax.random.normal(kw, (OUT * K, IN), dtype=jnp.float32) * 0.05
    bias = jax.random.normal(kb, (OUT * K,), dtype=jnp.float32) * 0.05

    # One-time parameter prep (cached at init in a real model).
    wt, b2 = prepare_maxout_params(weight, bias, out_features=OUT, k=K)

    out = maxout_forward(x, wt, b2, out_features=OUT, k=K)
    out = jax.block_until_ready(out)

    # Pure-JAX reference mirroring the kernel's numerics (bf16 operands into
    # the MXU, f32 accumulation, f32 bias add + max).
    y_ref = jnp.dot(x.astype(jnp.bfloat16), weight.T.astype(jnp.bfloat16),
                    preferred_element_type=jnp.float32) + bias
    ref = y_ref.reshape(B, OUT, K).max(-1)

    assert out.shape == (B, OUT), out.shape
    assert jnp.allclose(out, ref, atol=1e-2, rtol=1e-2), "mismatch vs reference"
    print("KERNEL_OK")
</pallas_src>

<mosaic_0001>
module attributes {stable_mosaic.version = 11 : i64} {
  func.func @_maxout_kernel(%arg0: i32, %arg1: i32, %arg2: memref<32x64xf32, #tpu.memory_space<vmem>>, %arg3: memref<64x256xbf16, #tpu.memory_space<vmem>>, %arg4: memref<1x256xf32, #tpu.memory_space<vmem>>, %arg5: memref<32x128xf32, #tpu.memory_space<vmem>>, %arg6: memref<32x256xf32, #tpu.memory_space<vmem>>) attributes {dimension_semantics = [#tpu.dimension_semantics<parallel>, #tpu.dimension_semantics<arbitrary>], iteration_bounds = array<i64: 1, 1>, scalar_prefetch = 0 : i64, scratch_operands = 1 : i64, tpu.core_type = #tpu.core_type<tc>, window_params = [{transform_indices = @transform_0, window_bounds = array<i64: 32, 64>}, {transform_indices = @transform_1, window_bounds = array<i64: 64, 256>}, {pipeline_mode = #tpu.pipeline_mode<synchronous>, transform_indices = @transform_2, window_bounds = array<i64: 1, 256>}, {transform_indices = @transform_3, window_bounds = array<i64: 32, 128>}]} {
    %c0_i32 = arith.constant 0 : i32
    %0 = arith.cmpi eq, %arg1, %c0_i32 : i32
    %1 = arith.extui %0 : i1 to i32
    %c0_i32_0 = arith.constant 0 : i32
    %2 = arith.cmpi ne, %1, %c0_i32_0 : i32
    scf.if %2 {
      %cst_10 = arith.constant 0.000000e+00 : f32
      %13 = vector.broadcast %cst_10 : f32 to vector<32x256xf32>
      %c0_11 = arith.constant 0 : index
      %c0_12 = arith.constant 0 : index
      %14 = vector.load %arg6[%c0_11, %c0_12] : memref<32x256xf32, #tpu.memory_space<vmem>>, vector<32x256xf32>
      tpu.vector_store %arg6[%c0_11, %c0_12], %13 {strides = array<i32>} : memref<32x256xf32, #tpu.memory_space<vmem>>, vector<32x256xf32>,
    } else {
    }
    %c0 = arith.constant 0 : index
    %c0_1 = arith.constant 0 : index
    %3 = vector.load %arg6[%c0, %c0_1] : memref<32x256xf32, #tpu.memory_space<vmem>>, vector<32x256xf32>
    %c0_2 = arith.constant 0 : index
    %c0_3 = arith.constant 0 : index
    %4 = vector.load %arg2[%c0_2, %c0_3] : memref<32x64xf32, #tpu.memory_space<vmem>>, vector<32x64xf32>
    %5 = arith.truncf %4 : vector<32x64xf32> to vector<32x64xbf16>
    %c0_4 = arith.constant 0 : index
    %c0_5 = arith.constant 0 : index
    %6 = vector.load %arg3[%c0_4, %c0_5] : memref<64x256xbf16, #tpu.memory_space<vmem>>, vector<64x256xbf16>
    %cst = arith.constant dense<0.000000e+00> : vector<32x256xf32>
    %7 = tpu.matmul %5, %6, %cst {dimension_numbers = #tpu.dot_dimension_numbers<[1], [0], [0], [1], [0, 0, 1, 1], [], []>} : vector<32x64xbf16>, vector<64x256xbf16>, vector<32x256xf32> -> vector<32x256xf32>
    %8 = arith.addf %3, %7 : vector<32x256xf32>
    %c0_6 = arith.constant 0 : index
    %c0_7 = arith.constant 0 : index
    %9 = vector.load %arg6[%c0_6, %c0_7] : memref<32x256xf32, #tpu.memory_space<vmem>>, vector<32x256xf32>
    tpu.vector_store %arg6[%c0_6, %c0_7], %8 {strides = array<i32>} : memref<32x256xf32, #tpu.memory_space<vmem>>, vector<32x256xf32>,
    %c0_i32_8 = arith.constant 0 : i32
    %10 = arith.cmpi eq, %arg1, %c0_i32_8 : i32
    %11 = arith.extui %10 : i1 to i32
    %c0_i32_9 = arith.constant 0 : i32
    %12 = arith.cmpi ne, %11, %c0_i32_9 : i32
    scf.if %12 {
      %c0_10 = arith.constant 0 : index
      %c0_11 = arith.constant 0 : index
      %13 = vector.load %arg6[%c0_10, %c0_11] : memref<32x256xf32, #tpu.memory_space<vmem>>, vector<32x256xf32>
      %c0_12 = arith.constant 0 : index
      %c0_13 = arith.constant 0 : index
      %14 = vector.load %arg4[%c0_12, %c0_13] : memref<1x256xf32, #tpu.memory_space<vmem>>, vector<1x256xf32>
      %15 = vector.broadcast %14 : vector<1x256xf32> to vector<32x256xf32>
      %16 = arith.addf %13, %15 : vector<32x256xf32>
      %17 = vector.extract_strided_slice %16 {offsets = [0, 0], sizes = [32, 128], strides = [1, 1]} : vector<32x256xf32> to vector<32x128xf32>
      %18 = vector.extract_strided_slice %16 {offsets = [0, 128], sizes = [32, 128], strides = [1, 1]} : vector<32x256xf32> to vector<32x128xf32>
      %19 = arith.maximumf %17, %18 : vector<32x128xf32>
      %c0_14 = arith.constant 0 : index
      %c0_15 = arith.constant 0 : index
      %20 = vector.load %arg5[%c0_14, %c0_15] : memref<32x128xf32, #tpu.memory_space<vmem>>, vector<32x128xf32>
      tpu.vector_store %arg5[%c0_14, %c0_15], %19 {strides = array<i32>} : memref<32x128xf32, #tpu.memory_space<vmem>>, vector<32x128xf32>,
    } else {
    }
    return
  }
  func.func @transform_0(%arg0: i32, %arg1: i32) -> (i32, i32) {
    %c0_i32 = arith.constant 0 : i32
    return %arg0, %arg1 : i32, i32
  }
  func.func @transform_1(%arg0: i32, %arg1: i32) -> (i32, i32) {
    %c0_i32 = arith.constant 0 : i32
    %c0_i32_0 = arith.constant 0 : i32
    return %arg1, %c0_i32 : i32, i32
  }
  func.func @transform_2(%arg0: i32, %arg1: i32) -> (i32, i32) {
    %c0_i32 = arith.constant 0 : i32
    %c0_i32_0 = arith.constant 0 : i32
    %c0_i32_1 = arith.constant 0 : i32
    return %c0_i32, %c0_i32_0 : i32, i32
  }
  func.func @transform_3(%arg0: i32, %arg1: i32) -> (i32, i32) {
    %c0_i32 = arith.constant 0 : i32
    %c0_i32_0 = arith.constant 0 : i32
    return %arg0, %c0_i32 : i32, i32
  }
}

</mosaic_0001>

<llo_original>
// kernel: tpu_custom_call.1
$region0: #{tpu_custom_call.1}
  #allocation0 [shape = 'u32[]', space=smem, size = 0x4, offset = 0x4, fixed_abs, tag = 'smem constant byte address 0x4 - core index']
  #allocation1 [shape = 'u32[144,128]{1,0:T(1,128)}', space=vmem, size = 0x12000, scoped, tag = 'internal scratch']
  #allocation2 [shape = 'f32[32,256]{1,0:T(8,128)}', space=vmem, size = 0x8000, scoped, tag = 'scratch operand']
  %s0 = inlined_call_operand.hbm [shape: f32[32,64], index: 0, kind: input, shape index: {}]
  %s1 = inlined_call_operand.hbm [shape: bf16[64,256], index: 1, kind: input, shape index: {}]
  %s2 = inlined_call_operand.vmem [shape: f32[1,256], index: 2, kind: input, shape index: {}]
  %s3 = inlined_call_operand.hbm [shape: f32[32,128], index: 3, kind: output, shape index: {}]
  %s4 = sld [smem:[#allocation0]]
  $region38: #{tpu_custom_call.1} parent=0
    _
  %s6 = ssub.s32 1, %s4
  %s7 = scalar_select 0, %s6, %s4
  $region1: #{tpu_custom_call.1} parent=0
    #allocation3 [shape = 'u8[16384]{0}', space=vmem, size = 0x4000, scoped, tag = 'input window, operand 0, single buffered']
    #allocation4 [shape = 's32[1]{0}', space=sflag, size = 0x4, scoped, tag = 'scoped memory for tpu_custom_call.1']
    #allocation5 [shape = 's32[1]{0}', space=sflag, size = 0x4, scoped, tag = 'scoped memory for tpu_custom_call.1']
    #allocation6 [shape = 'u8[32768]{0}', space=vmem, size = 0x8000, scoped, tag = 'input window, operand 1, single buffered']
    #allocation7 [shape = 's32[1]{0}', space=sflag, size = 0x4, scoped, tag = 'scoped memory for tpu_custom_call.1']
    #allocation8 [shape = 'u8[16384]{0}', space=vmem, size = 0x4000, scoped, tag = 'output window, operand 0, single buffered']
    %8 = vsyncpa [#allocation4], 0
    %9 = vsyncpa [#allocation7], 0
    %10 = vsyncpa [#allocation5], 0
    // Predicated region
    $region2: #{tpu_custom_call.1} parent=1 // pred_check
      _
    $region3: #{tpu_custom_call.1} parent=1 // pred_check_branch
      %12 = sbr.rel (0) target = $region5
    $region4: #{tpu_custom_call.1} parent=1 // pred_region
      %s14 = ssub.s32 512, 512
      %15 = vsyncadd [#allocation4], %s14
      %s16 = sshll.u32 [#allocation3], 4
      %s17 = int_to_ptr.vmem [resolvable:$true] %s16
      %22 = dma.hbm_to_vmem [thread:$0]  %s0, 512, %s17, [#allocation4], 128, 128, 8
    $region5: #{tpu_custom_call.1} parent=1 // pred_fallthru
      _
    // Predicated region
    $region6: #{tpu_custom_call.1} parent=1 // pred_check
      _
    $region7: #{tpu_custom_call.1} parent=1 // pred_check_branch
      %24 = sbr.rel (0) target = $region9
    $region8: #{tpu_custom_call.1} parent=1 // pred_region
      %s26 = ssub.s32 1024, 1024
      %27 = vsyncadd [#allocation7], %s26
      %s28 = sshll.u32 [#allocation6], 4
      %s29 = int_to_ptr.vmem [resolvable:$true] %s28
      %34 = dma.hbm_to_vmem [thread:$0]  %s1, 1024, %s29, [#allocation7], 128, 128, 8
    $region9: #{tpu_custom_call.1} parent=1 // pred_fallthru
      _
    // Predicated region
    $region10: #{tpu_custom_call.1} parent=1 // pred_check
      _
    $region11: #{tpu_custom_call.1} parent=1 // pred_check_branch
      %36 = sbr.rel (0) target = $region13
    $region12: #{tpu_custom_call.1} parent=1 // pred_region
      _
    $region13: #{tpu_custom_call.1} parent=1 // pred_fallthru
      _
    // Predicated region
    $region14: #{tpu_custom_call.1} parent=1 // pred_check
      _
    $region15: #{tpu_custom_call.1} parent=1 // pred_check_branch
      %38 = sbr.rel (0) target = $region17
    $region16: #{tpu_custom_call.1} parent=1 // pred_region
      %39 = dma.done [#allocation4], 512
    $region17: #{tpu_custom_call.1} parent=1 // pred_fallthru
      _
    // Predicated region
    $region18: #{tpu_custom_call.1} parent=1 // pred_check
      _
    $region19: #{tpu_custom_call.1} parent=1 // pred_check_branch
      %41 = sbr.rel (0) target = $region21
    $region20: #{tpu_custom_call.1} parent=1 // pred_region
      %42 = dma.done [#allocation7], 1024
    $region21: #{tpu_custom_call.1} parent=1 // pred_fallthru
      _
    %p44 = scmp.eq.s32.totalorder 0, 0
    // Predicated region
    $region22: #{tpu_custom_call.1} parent=1 // pred_check
      %p45 = pneg %p44
    $region23: #{tpu_custom_call.1} parent=1 // pred_check_branch
      %47 = sbr.rel (%p45) target = $region25
    $region24: #{tpu_custom_call.1} parent=1 // pred_region
      %48 = vst [vmem:[#allocation2] sm:$0xff] 0.0
      %49 = vst [vmem:[#allocation2 + $0x8] sm:$0xff] 0.0
      %50 = vst [vmem:[#allocation2 + $0x10] sm:$0xff] 0.0
      %51 = vst [vmem:[#allocation2 + $0x18] sm:$0xff] 0.0
      %52 = vst [vmem:[#allocation2 + $0x20] sm:$0xff] 0.0
      %53 = vst [vmem:[#allocation2 + $0x28] sm:$0xff] 0.0
      %54 = vst [vmem:[#allocation2 + $0x30] sm:$0xff] 0.0
      %55 = vst [vmem:[#allocation2 + $0x38] sm:$0xff] 0.0
    $region25: #{tpu_custom_call.1} parent=1 // pred_fallthru
      _
    %v56 = vld [vmem:[#allocation2] sm:$0xff]
    %v57 = vld [vmem:[#allocation2 + $0x8] sm:$0xff]
    %v58 = vld [vmem:[#allocation2 + $0x10] sm:$0xff]
    %v59 = vld [vmem:[#allocation2 + $0x18] sm:$0xff]
    %v60 = vld [vmem:[#allocation2 + $0x20] sm:$0xff]
    %v61 = vld [vmem:[#allocation2 + $0x28] sm:$0xff]
    %v62 = vld [vmem:[#allocation2 + $0x30] sm:$0xff]
    %v63 = vld [vmem:[#allocation2 + $0x38] sm:$0xff]
    %v64 = vld [vmem:[#allocation3] sm:$0xff]
    %v65 = vld [vmem:[#allocation3 + $0x8] sm:$0xff]
    %v66 = vld [vmem:[#allocation3 + $0x10] sm:$0xff]
    %v67 = vld [vmem:[#allocation3 + $0x18] sm:$0xff]
    %v68 = vpack.c.bf16 %v65, %v64
    %v69 = vpack.c.bf16 %v67, %v66
    %v70 = vld [vmem:[#allocation6] sm:$0xff]
    %v71 = vld [vmem:[#allocation6 + $0x8] sm:$0xff]
    %v72 = vld [vmem:[#allocation6 + $0x10] sm:$0xff]
    %v73 = vld [vmem:[#allocation6 + $0x18] sm:$0xff]
    %v74 = vld [vmem:[#allocation6 + $0x20] sm:$0xff]
    %v75 = vld [vmem:[#allocation6 + $0x28] sm:$0xff]
    %v76 = vld [vmem:[#allocation6 + $0x30] sm:$0xff]
    %v77 = vld [vmem:[#allocation6 + $0x38] sm:$0xff]
    %v86 = vunpack.c.l.b16 %v70
    %v87 = vunpack.c.h.b16 %v70
    %v88 = vunpack.c.l.b16 %v71
    %v89 = vunpack.c.h.b16 %v71
    %v90 = vunpack.c.l.b16 %v72
    %v91 = vunpack.c.h.b16 %v72
    %v92 = vunpack.c.l.b16 %v73
    %v93 = vunpack.c.h.b16 %v73
    %v94 = vunpack.c.l.b16 %v74
    %v95 = vunpack.c.h.b16 %v74
    %v96 = vunpack.c.l.b16 %v75
    %v97 = vunpack.c.h.b16 %v75
    %v98 = vunpack.c.l.b16 %v76
    %v99 = vunpack.c.h.b16 %v76
    %v100 = vunpack.c.l.b16 %v77
    %v101 = vunpack.c.h.b16 %v77
    %v102 = vpack.c.b16 %v88, %v86
    %v103 = vpack.c.b16 %v89, %v87
    %v104 = vpack.c.b16 %v92, %v90
    %v105 = vpack.c.b16 %v93, %v91
    %v106 = vpack.c.b16 %v96, %v94
    %v107 = vpack.c.b16 %v97, %v95
    %v108 = vpack.c.b16 %v100, %v98
    %v109 = vpack.c.b16 %v101, %v99
    %vm118 = vcmask 523264
    %v120 = vsel %vm118, %v68, 0
    %v123 = vsel %vm118, %v69, 0
    %125 = vmatprep.subr.bf16.mxu0 0
    %126 = vmatpush1.bf16.msra.mxu0 0
    %127 = vmatprep.subr.bf16.mxu0 0
    %128 = vmatpush1.bf16.msra.mxu0 0
    %129 = vmatprep.subr.bf16.mxu0 0
    %130 = vmatpush1.bf16.msra.mxu0 0
    %131 = vmatprep.subr.bf16.mxu0 0
    %132 = vmatpush1.bf16.msra.mxu0 0
    %133 = vmatprep.subr.bf16.mxu0 %v109
    %134 = vmatpush1.bf16.msra.mxu0 %v108
    %135 = vmatprep.subr.bf16.mxu0 %v107
    %136 = vmatpush1.bf16.msra.mxu0 %v106
    %137 = vmatprep.subr.bf16.mxu0 %v105
    %138 = vmatpush1.bf16.msra.mxu0 %v104
    %139 = vmatprep.subr.bf16.mxu0 %v103
    %140 = vmatpush1.bf16.msra.mxu0 %v102
    %141 = vmatprep.subr.bf16.mxu0 0
    %142 = vmatpush2.bf16.msra.mxu0 0
    %143 = vmatprep.subr.bf16.mxu0 0
    %144 = vmatpush2.bf16.msra.mxu0 0
    %145 = vmatprep.subr.bf16.mxu0 0
    %146 = vmatpush2.bf16.msra.mxu0 0
    %147 = vmatprep.subr.bf16.mxu0 0
    %148 = vmatpush2.bf16.msra.mxu0 0
    %149 = vmatprep.subr.bf16.mxu0 0
    %150 = vmatpush2.bf16.msra.mxu0 0
    %151 = vmatprep.subr.bf16.mxu0 0
    %152 = vmatpush2.bf16.msra.mxu0 0
    %153 = vmatprep.subr.bf16.mxu0 0
    %154 = vmatpush2.bf16.msra.mxu0 0
    %155 = vmatprep.subr.bf16.mxu0 0
    %156 = vmatpush2.bf16.msra.mxu0 0
    %157 = vmatprep.mubr.bf16.mxu0 0
    %158 = vmatmul.mubr.bf16.gmra.mxu0 %v120
    %v159 = vpop.f32.mrf.mxu0
    %v160 = vadd.f32 0.0, %v159
    %v161 = vpop.f32.mrf.mxu0
    %v162 = vadd.f32 0.0, %v161
    %v163 = vpop.f32.mrf.mxu0
    %v164 = vadd.f32 0.0, %v163
    %v165 = vpop.f32.mrf.mxu0
    %v166 = vadd.f32 0.0, %v165
    %167 = vmatprep.mubr.bf16.mxu0 0
    %168 = vmatmul.mubr.bf16.gmra.mxu0 %v123
    %v169 = vpop.f32.mrf.mxu0
    %v170 = vadd.f32 0.0, %v169
    %v171 = vpop.f32.mrf.mxu0
    %v172 = vadd.f32 0.0, %v171
    %v173 = vpop.f32.mrf.mxu0
    %v174 = vadd.f32 0.0, %v173
    %v175 = vpop.f32.mrf.mxu0
    %v176 = vadd.f32 0.0, %v175
    %177 = vdwg.mxu0
    %v178 = vadd.f32 %v56, %v160
    %v179 = vadd.f32 %v57, %v162
    %v180 = vadd.f32 %v58, %v164
    %v181 = vadd.f32 %v59, %v166
    %v182 = vadd.f32 %v60, %v170
    %v183 = vadd.f32 %v61, %v172
    %v184 = vadd.f32 %v62, %v174
    %v185 = vadd.f32 %v63, %v176
    %186 = vst [vmem:[#allocation2] sm:$0xff] %v178
    %187 = vst [vmem:[#allocation2 + $0x8] sm:$0xff] %v179
    %188 = vst [vmem:[#allocation2 + $0x10] sm:$0xff] %v180
    %189 = vst [vmem:[#allocation2 + $0x18] sm:$0xff] %v181
    %190 = vst [vmem:[#allocation2 + $0x20] sm:$0xff] %v182
    %191 = vst [vmem:[#allocation2 + $0x28] sm:$0xff] %v183
    %192 = vst [vmem:[#allocation2 + $0x30] sm:$0xff] %v184
    %193 = vst [vmem:[#allocation2 + $0x38] sm:$0xff] %v185
    // Predicated region
    $region26: #{tpu_custom_call.1} parent=1 // pred_check
      %p194 = pneg %p44
    $region27: #{tpu_custom_call.1} parent=1 // pred_check_branch
      %196 = sbr.rel (%p194) target = $region29
    $region28: #{tpu_custom_call.1} parent=1 // pred_region
      %v197 = vld [vmem:[#allocation2] sm:$0xff]
      %v198 = vld [vmem:[#allocation2 + $0x8] sm:$0xff]
      %v199 = vld [vmem:[#allocation2 + $0x10] sm:$0xff]
      %v200 = vld [vmem:[#allocation2 + $0x18] sm:$0xff]
      %v201 = vld [vmem:[#allocation2 + $0x20] sm:$0xff]
      %v202 = vld [vmem:[#allocation2 + $0x28] sm:$0xff]
      %v203 = vld [vmem:[#allocation2 + $0x30] sm:$0xff]
      %v204 = vld [vmem:[#allocation2 + $0x38] sm:$0xff]
      %v205 = vld [vmem:[%s2] sm:$0x3]
      %v207 = vlaneseq
      %v208 = vshrl.u32 %v207, 7
      %v209 = vsub.s32 0, %v208
      %v210 = vrot.slane %v205, %v209
      %v211 = vlaneseq
      %v212 = vshrl.u32 %v211, 7
      %v213 = vsub.s32 1, %v212
      %v214 = vrot.slane %v205, %v213
      %v217 = vadd.f32 %v197, %v210
      %v218 = vadd.f32 %v198, %v214
      %v219 = vadd.f32 %v199, %v210
      %v220 = vadd.f32 %v200, %v214
      %v221 = vadd.f32 %v201, %v210
      %v222 = vadd.f32 %v202, %v214
      %v223 = vadd.f32 %v203, %v210
      %v224 = vadd.f32 %v204, %v214
      %v225 = vmax.f32 %v217, %v218
      %v226 = vmax.f32 %v219, %v220
      %v227 = vmax.f32 %v221, %v222
      %v228 = vmax.f32 %v223, %v224
      %229 = vst [vmem:[#allocation8] sm:$0xff] %v225
      %230 = vst [vmem:[#allocation8 + $0x8] sm:$0xff] %v226
      %231 = vst [vmem:[#allocation8 + $0x10] sm:$0xff] %v227
      %232 = vst [vmem:[#allocation8 + $0x18] sm:$0xff] %v228
    $region29: #{tpu_custom_call.1} parent=1 // pred_fallthru
      _
    // Predicated region
    $region30: #{tpu_custom_call.1} parent=1 // pred_check
      _
    $region31: #{tpu_custom_call.1} parent=1 // pred_check_branch
      %234 = sbr.rel (0) target = $region33
    $region32: #{tpu_custom_call.1} parent=1 // pred_region
      %s236 = ssub.s32 512, 512
      %237 = vsyncadd [#allocation5], %s236
      %s238 = sshll.u32 [#allocation8], 4
      %s239 = int_to_ptr.vmem [resolvable:$true] %s238
      %244 = dma.vmem_to_hbm [thread:$0]  %s239, 512, %s3, [#allocation5], 128, 128, 8
    $region33: #{tpu_custom_call.1} parent=1 // pred_fallthru
      _
    // Predicated region
    $region34: #{tpu_custom_call.1} parent=1 // pred_check
      _
    $region35: #{tpu_custom_call.1} parent=1 // pred_check_branch
      %246 = sbr.rel (0) target = $region37
    $region36: #{tpu_custom_call.1} parent=1 // pred_region
      %247 = dma.done [#allocation5], 512
    $region37: #{tpu_custom_call.1} parent=1 // pred_fallthru
      _
    %248 = vsyncpa [#allocation4], 1
    %249 = vsyncpa [#allocation7], 1
    %250 = vsyncpa [#allocation5], 1

</llo_original>
